<compile_context>
chip_gen: v5e
topology: v5e:2x2
jax: 0.10.0
libtpu: 0.0.40
codegen_flags: <defaults>
</compile_context>

<pallas_src>
import jax
import jax.numpy as jnp
from jax import lax
from jax.experimental import pallas as pl
from jax.experimental.pallas import tpu as pltpu


def _leaky(x, slope=0.01):
    # PyTorch default negative_slope for nn.LeakyReLU / F.leaky_relu is 0.01
    return jnp.where(x >= 0, x, slope * x)


def _make_textcnn_kernel(B, P_pad, E, k_max, nO):
    """B: batch, P_pad: padded position count, E: emb dim, k_max: largest kernel."""

    def kernel(x_ref, w_ref, b_ref, mask_ref,
               w1_ref, b1_ref, w2_ref, b2_ref, out_ref):
        x = x_ref[...]                                   # (B, L_pad, E) f32

        # Conv over ALL kernel sizes at once: accumulate one matmul per tap j
        # against the j-th packed weight slab w_ref[j] (E, nO).  Taps j >= k
        # are zero in that channel group's slab, so no per-kernel-size loop.
        def tap(j):
            xs = x[:, j:j + P_pad, :].reshape(B * P_pad, E)   # tile-aligned reshape
            return jnp.dot(xs, w_ref[j], preferred_element_type=jnp.float32)

        acc = tap(0)
        for j in range(1, k_max):
            acc = acc + tap(j)                           # (B*P_pad, nO)

        # Conv1d bias + LeakyReLU once on the batched result.
        act = _leaky(acc + b_ref[...])                   # (B*P_pad, nO)

        # Free reshape (P_pad is a sublane multiple), broadcast the additive
        # -1e30 mask over batch (kills p >= L-k+1 per channel group and the
        # padded rows), then one vectorized max over positions
        # == F.max_pool1d over the full length; channel concat is implicit
        # in the packed layout.
        act = act.reshape(B, P_pad, nO) + mask_ref[...]  # (B, P_pad, nO)
        feat = jnp.max(act, axis=1)                      # (B, nO)

        # linear1(leaky_relu(feat));  fc_dropout is identity in eval mode
        h = lax.dot_general(_leaky(feat), w1_ref[...], (((1,), (0,)), ((), ())),
                            preferred_element_type=jnp.float32) + b1_ref[...]
        # linear2(leaky_relu(h))
        out = lax.dot_general(_leaky(h), w2_ref[...], (((1,), (0,)), ((), ())),
                              preferred_element_type=jnp.float32) + b2_ref[...]
        out_ref[...] = out

    return kernel


def textcnn_forward(x_idx, params, kernel_sizes, num_classes):
    """x_idx: (L, B) int32 token ids (PyTorch sequence-first convention)."""
    kernel_sizes = tuple(kernel_sizes)
    n = len(kernel_sizes)
    k_max, k_min = max(kernel_sizes), min(kernel_sizes)

    # --- glue: embedding lookup producing (B, L, E) directly (transpose the
    # tiny int32 index array, not the f32 embeddings); embedding_dropout is
    # identity in eval mode.
    x = jnp.take(params["embedding"], x_idx.T, axis=0).astype(jnp.float32)  # (B, L, E)
    B, L, E = x.shape
    assert k_max <= L, "kernel size larger than sequence length"
    O = params["conv_w"][0].shape[0]
    nO = n * O
    P = L - k_min + 1                        # valid positions for smallest kernel
    P_pad = -(-P // 8) * 8                   # round up to f32 sublane tile (8)
    L_pad = P_pad + k_max - 1                # every x[:, j:j+P_pad, :] in range

    x_pad = jnp.pad(x, ((0, 0), (0, L_pad - L), (0, 0)))            # (B, L_pad, E)

    # per-tap packed conv weights: (O, E, k) -> (k, E, O), zero-pad taps to
    # k_max, concatenate groups along the output-channel axis -> (k_max, E, nO)
    blocks, biases = [], []
    for idx, k in enumerate(kernel_sizes):
        w = jnp.transpose(params["conv_w"][idx], (2, 1, 0))          # (k, E, O)
        blocks.append(jnp.pad(w, ((0, k_max - k), (0, 0), (0, 0))))
        biases.append(params["conv_b"][idx])
    w_taps = jnp.concatenate(blocks, axis=2)                         # (k_max, E, nO)
    b_big = jnp.concatenate(biases, axis=0).reshape(1, nO)           # (1, nO)

    # additive position mask, broadcast over batch in-kernel: 0 where
    # p < L-k+1 for that channel group, else -1e30 (also covers the padded
    # rows p in [P, P_pad)).
    limit = jnp.concatenate(
        [jnp.full((O,), L - k + 1, jnp.int32) for k in kernel_sizes])  # (nO,)
    pos = jnp.arange(P_pad, dtype=jnp.int32)[:, None]                  # (P_pad, 1)
    neg_mask = jnp.where(pos < limit[None, :], 0.0, -1e30)
    neg_mask = neg_mask.astype(jnp.float32)[None]                      # (1, P_pad, nO)

    # pre-transpose MLP weights so each RHS contracts on dim 0
    w1t = jnp.transpose(params["w1"])                                  # (nO, hidden)
    b1 = params["b1"].reshape(1, -1)
    w2t = jnp.transpose(params["w2"])                                  # (hidden, C)
    b2 = params["b2"].reshape(1, -1)

    kernel = _make_textcnn_kernel(B, P_pad, E, k_max, nO)
    vmem = pl.BlockSpec(memory_space=pltpu.MemorySpace.VMEM)
    inputs = [x_pad, w_taps, b_big, neg_mask, w1t, b1, w2t, b2]

    # Gridless single-core launch: total resident data << VMEM on all of
    # v5e/v6e/v7x, and any grid would only add per-step overhead at B=2.
    return pl.pallas_call(
        kernel,
        out_shape=jax.ShapeDtypeStruct((B, num_classes), jnp.float32),
        in_specs=[vmem] * len(inputs),
        out_specs=vmem,
    )(*inputs)


def reference_forward(x_idx, params, kernel_sizes):
    """Pure-JAX reference matching the PyTorch forward (eval mode)."""
    emb = jnp.take(params["embedding"], x_idx, axis=0)        # (L, B, E)
    x = jnp.transpose(emb, (1, 0, 2)).astype(jnp.float32)     # (B, L, E)
    B, L, E = x.shape
    feats = []
    for idx, k in enumerate(kernel_sizes):
        w = params["conv_w"][idx]          # (O, E, k)  (PyTorch Conv1d layout)
        b = params["conv_b"][idx]          # (O,)
        L_out = L - k + 1
        acc = jnp.zeros((B, L_out, w.shape[0]), jnp.float32)
        for j in range(k):
            acc = acc + jnp.einsum("ble,oe->blo", x[:, j:j + L_out, :], w[:, :, j])
        acc = _leaky(acc + b[None, None, :])
        feats.append(jnp.max(acc, axis=1))
    feat = jnp.concatenate(feats, axis=1)
    h = _leaky(feat) @ params["w1"].T + params["b1"]
    return _leaky(h) @ params["w2"].T + params["b2"]


def init_params(key, len_vocab, emb_dim, kernel_num, kernel_sizes, num_classes):
    n = len(kernel_sizes)
    in_features = kernel_num * n
    hidden = in_features // 2
    keys = jax.random.split(key, 1 + 2 * n + 4)
    ki = iter(keys)

    params = {"embedding": jax.random.normal(next(ki), (len_vocab, emb_dim),
                                             dtype=jnp.float32)}
    conv_w, conv_b = [], []
    for k in kernel_sizes:
        bound = (emb_dim * k) ** -0.5
        # PyTorch Conv1d weight layout (O, E, k)
        conv_w.append(jax.random.uniform(next(ki), (kernel_num, emb_dim, k),
                                         minval=-bound, maxval=bound,
                                         dtype=jnp.float32))
        conv_b.append(jax.random.uniform(next(ki), (kernel_num,),
                                         minval=-bound, maxval=bound,
                                         dtype=jnp.float32))
    params["conv_w"] = conv_w
    params["conv_b"] = conv_b

    b1 = in_features ** -0.5
    params["w1"] = jax.random.uniform(next(ki), (hidden, in_features),
                                      minval=-b1, maxval=b1, dtype=jnp.float32)
    params["b1"] = jax.random.uniform(next(ki), (hidden,),
                                      minval=-b1, maxval=b1, dtype=jnp.float32)
    b2 = hidden ** -0.5
    params["w2"] = jax.random.uniform(next(ki), (num_classes, hidden),
                                      minval=-b2, maxval=b2, dtype=jnp.float32)
    params["b2"] = jax.random.uniform(next(ki), (num_classes,),
                                      minval=-b2, maxval=b2, dtype=jnp.float32)
    return params


if __name__ == "__main__":
    # Small shapes consistent with the module.
    emb_dim = 32
    kernel_sizes = (3, 4, 5)
    kernel_num = 8
    len_vocab = 100
    num_classes = 4          # stands in for args.num_classes
    seq_len, batch = 16, 2

    key = jax.random.PRNGKey(0)
    k_params, k_x = jax.random.split(key)
    params = init_params(k_params, len_vocab, emb_dim, kernel_num,
                         kernel_sizes, num_classes)
    # PyTorch sequence-first input: (L, B) token ids
    x_idx = jax.random.randint(k_x, (seq_len, batch), 0, len_vocab,
                               dtype=jnp.int32)

    out = textcnn_forward(x_idx, params, kernel_sizes, num_classes)
    out = jax.block_until_ready(out)

    ref = reference_forward(x_idx, params, kernel_sizes)
    assert out.shape == (batch, num_classes)
    assert jnp.allclose(out, ref, atol=1e-2, rtol=1e-2), "kernel mismatch vs reference"

    print("KERNEL_OK")
</pallas_src>

<mosaic_0001>
module attributes {stable_mosaic.version = 11 : i64} {
  func.func @kernel(%arg0: memref<2x20x32xf32, #tpu.memory_space<vmem>>, %arg1: memref<5x32x24xf32, #tpu.memory_space<vmem>>, %arg2: memref<1x24xf32, #tpu.memory_space<vmem>>, %arg3: memref<1x16x24xf32, #tpu.memory_space<vmem>>, %arg4: memref<24x12xf32, #tpu.memory_space<vmem>>, %arg5: memref<1x12xf32, #tpu.memory_space<vmem>>, %arg6: memref<12x4xf32, #tpu.memory_space<vmem>>, %arg7: memref<1x4xf32, #tpu.memory_space<vmem>>, %arg8: memref<2x4xf32, #tpu.memory_space<vmem>>) attributes {dimension_semantics = [], scalar_prefetch = 0 : i64, scratch_operands = 0 : i64, tpu.core_type = #tpu.core_type<tc>} {
    %c0 = arith.constant 0 : index
    %c0_0 = arith.constant 0 : index
    %c0_1 = arith.constant 0 : index
    %0 = vector.load %arg0[%c0, %c0_0, %c0_1] : memref<2x20x32xf32, #tpu.memory_space<vmem>>, vector<2x20x32xf32>
    %1 = vector.extract_strided_slice %0 {offsets = [0, 0, 0], sizes = [2, 16, 32], strides = [1, 1, 1]} : vector<2x20x32xf32> to vector<2x16x32xf32>
    %2 = vector.shape_cast %1 : vector<2x16x32xf32> to vector<32x32xf32>
    %c0_2 = arith.constant 0 : index
    %c0_3 = arith.constant 0 : index
    %c0_4 = arith.constant 0 : index
    %3 = vector.load %arg1[%c0_2, %c0_3, %c0_4] : memref<5x32x24xf32, #tpu.memory_space<vmem>>, vector<1x32x24xf32>
    %4 = vector.shape_cast %3 : vector<1x32x24xf32> to vector<32x24xf32>
    %cst = arith.constant dense<0.000000e+00> : vector<32x24xf32>
    %5 = tpu.matmul %2, %4, %cst {dimension_numbers = #tpu.dot_dimension_numbers<[1], [0], [0], [1], [0, 0, 1, 1], [], []>} : vector<32x32xf32>, vector<32x24xf32>, vector<32x24xf32> -> vector<32x24xf32>
    %6 = vector.extract_strided_slice %0 {offsets = [0, 1, 0], sizes = [2, 16, 32], strides = [1, 1, 1]} : vector<2x20x32xf32> to vector<2x16x32xf32>
    %7 = vector.shape_cast %6 : vector<2x16x32xf32> to vector<32x32xf32>
    %c1 = arith.constant 1 : index
    %c0_5 = arith.constant 0 : index
    %c0_6 = arith.constant 0 : index
    %8 = vector.load %arg1[%c1, %c0_5, %c0_6] : memref<5x32x24xf32, #tpu.memory_space<vmem>>, vector<1x32x24xf32>
    %9 = vector.shape_cast %8 : vector<1x32x24xf32> to vector<32x24xf32>
    %cst_7 = arith.constant dense<0.000000e+00> : vector<32x24xf32>
    %10 = tpu.matmul %7, %9, %cst_7 {dimension_numbers = #tpu.dot_dimension_numbers<[1], [0], [0], [1], [0, 0, 1, 1], [], []>} : vector<32x32xf32>, vector<32x24xf32>, vector<32x24xf32> -> vector<32x24xf32>
    %11 = arith.addf %5, %10 : vector<32x24xf32>
    %12 = vector.extract_strided_slice %0 {offsets = [0, 2, 0], sizes = [2, 16, 32], strides = [1, 1, 1]} : vector<2x20x32xf32> to vector<2x16x32xf32>
    %13 = vector.shape_cast %12 : vector<2x16x32xf32> to vector<32x32xf32>
    %c2 = arith.constant 2 : index
    %c0_8 = arith.constant 0 : index
    %c0_9 = arith.constant 0 : index
    %14 = vector.load %arg1[%c2, %c0_8, %c0_9] : memref<5x32x24xf32, #tpu.memory_space<vmem>>, vector<1x32x24xf32>
    %15 = vector.shape_cast %14 : vector<1x32x24xf32> to vector<32x24xf32>
    %cst_10 = arith.constant dense<0.000000e+00> : vector<32x24xf32>
    %16 = tpu.matmul %13, %15, %cst_10 {dimension_numbers = #tpu.dot_dimension_numbers<[1], [0], [0], [1], [0, 0, 1, 1], [], []>} : vector<32x32xf32>, vector<32x24xf32>, vector<32x24xf32> -> vector<32x24xf32>
    %17 = arith.addf %11, %16 : vector<32x24xf32>
    %18 = vector.extract_strided_slice %0 {offsets = [0, 3, 0], sizes = [2, 16, 32], strides = [1, 1, 1]} : vector<2x20x32xf32> to vector<2x16x32xf32>
    %19 = vector.shape_cast %18 : vector<2x16x32xf32> to vector<32x32xf32>
    %c3 = arith.constant 3 : index
    %c0_11 = arith.constant 0 : index
    %c0_12 = arith.constant 0 : index
    %20 = vector.load %arg1[%c3, %c0_11, %c0_12] : memref<5x32x24xf32, #tpu.memory_space<vmem>>, vector<1x32x24xf32>
    %21 = vector.shape_cast %20 : vector<1x32x24xf32> to vector<32x24xf32>
    %cst_13 = arith.constant dense<0.000000e+00> : vector<32x24xf32>
    %22 = tpu.matmul %19, %21, %cst_13 {dimension_numbers = #tpu.dot_dimension_numbers<[1], [0], [0], [1], [0, 0, 1, 1], [], []>} : vector<32x32xf32>, vector<32x24xf32>, vector<32x24xf32> -> vector<32x24xf32>
    %23 = arith.addf %17, %22 : vector<32x24xf32>
    %24 = vector.extract_strided_slice %0 {offsets = [0, 4, 0], sizes = [2, 16, 32], strides = [1, 1, 1]} : vector<2x20x32xf32> to vector<2x16x32xf32>
    %25 = vector.shape_cast %24 : vector<2x16x32xf32> to vector<32x32xf32>
    %c4 = arith.constant 4 : index
    %c0_14 = arith.constant 0 : index
    %c0_15 = arith.constant 0 : index
    %26 = vector.load %arg1[%c4, %c0_14, %c0_15] : memref<5x32x24xf32, #tpu.memory_space<vmem>>, vector<1x32x24xf32>
    %27 = vector.shape_cast %26 : vector<1x32x24xf32> to vector<32x24xf32>
    %cst_16 = arith.constant dense<0.000000e+00> : vector<32x24xf32>
    %28 = tpu.matmul %25, %27, %cst_16 {dimension_numbers = #tpu.dot_dimension_numbers<[1], [0], [0], [1], [0, 0, 1, 1], [], []>} : vector<32x32xf32>, vector<32x24xf32>, vector<32x24xf32> -> vector<32x24xf32>
    %29 = arith.addf %23, %28 : vector<32x24xf32>
    %c0_17 = arith.constant 0 : index
    %c0_18 = arith.constant 0 : index
    %30 = vector.load %arg2[%c0_17, %c0_18] : memref<1x24xf32, #tpu.memory_space<vmem>>, vector<1x24xf32>
    %31 = vector.broadcast %30 : vector<1x24xf32> to vector<32x24xf32>
    %32 = arith.addf %29, %31 : vector<32x24xf32>
    %cst_19 = arith.constant 0.000000e+00 : f32
    %33 = vector.broadcast %cst_19 : f32 to vector<32x24xf32>
    %34 = arith.cmpf oge, %32, %33 : vector<32x24xf32>
    %cst_20 = arith.constant 0.00999999977 : f32
    %35 = vector.broadcast %cst_20 : f32 to vector<32x24xf32>
    %36 = arith.mulf %35, %32 : vector<32x24xf32>
    %37 = arith.select %34, %32, %36 : vector<32x24xi1>, vector<32x24xf32>
    %38 = vector.shape_cast %37 : vector<32x24xf32> to vector<2x16x24xf32>
    %c0_21 = arith.constant 0 : index
    %c0_22 = arith.constant 0 : index
    %c0_23 = arith.constant 0 : index
    %39 = vector.load %arg3[%c0_21, %c0_22, %c0_23] : memref<1x16x24xf32, #tpu.memory_space<vmem>>, vector<1x16x24xf32>
    %40 = vector.broadcast %39 : vector<1x16x24xf32> to vector<2x16x24xf32>
    %41 = arith.addf %38, %40 : vector<2x16x24xf32>
    %cst_24 = arith.constant dense<0xFF800000> : vector<2x24xf32>
    %42 = vector.multi_reduction <maximumf>, %41, %cst_24 [1] : vector<2x16x24xf32> to vector<2x24xf32>
    %cst_25 = arith.constant 0.000000e+00 : f32
    %43 = vector.broadcast %cst_25 : f32 to vector<2x24xf32>
    %44 = arith.cmpf oge, %42, %43 : vector<2x24xf32>
    %cst_26 = arith.constant 0.00999999977 : f32
    %45 = vector.broadcast %cst_26 : f32 to vector<2x24xf32>
    %46 = arith.mulf %45, %42 : vector<2x24xf32>
    %47 = arith.select %44, %42, %46 : vector<2x24xi1>, vector<2x24xf32>
    %c0_27 = arith.constant 0 : index
    %c0_28 = arith.constant 0 : index
    %48 = vector.load %arg4[%c0_27, %c0_28] : memref<24x12xf32, #tpu.memory_space<vmem>>, vector<24x12xf32>
    %cst_29 = arith.constant dense<0.000000e+00> : vector<2x12xf32>
    %49 = tpu.matmul %47, %48, %cst_29 {dimension_numbers = #tpu.dot_dimension_numbers<[1], [0], [0], [1], [0, 0, 1, 1], [], []>} : vector<2x24xf32>, vector<24x12xf32>, vector<2x12xf32> -> vector<2x12xf32>
    %c0_30 = arith.constant 0 : index
    %c0_31 = arith.constant 0 : index
    %50 = vector.load %arg5[%c0_30, %c0_31] : memref<1x12xf32, #tpu.memory_space<vmem>>, vector<1x12xf32>
    %51 = vector.broadcast %50 : vector<1x12xf32> to vector<2x12xf32>
    %52 = arith.addf %49, %51 : vector<2x12xf32>
    %cst_32 = arith.constant 0.000000e+00 : f32
    %53 = vector.broadcast %cst_32 : f32 to vector<2x12xf32>
    %54 = arith.cmpf oge, %52, %53 : vector<2x12xf32>
    %cst_33 = arith.constant 0.00999999977 : f32
    %55 = vector.broadcast %cst_33 : f32 to vector<2x12xf32>
    %56 = arith.mulf %55, %52 : vector<2x12xf32>
    %57 = arith.select %54, %52, %56 : vector<2x12xi1>, vector<2x12xf32>
    %c0_34 = arith.constant 0 : index
    %c0_35 = arith.constant 0 : index
    %58 = vector.load %arg6[%c0_34, %c0_35] : memref<12x4xf32, #tpu.memory_space<vmem>>, vector<12x4xf32>
    %cst_36 = arith.constant dense<0.000000e+00> : vector<2x4xf32>
    %59 = tpu.matmul %57, %58, %cst_36 {dimension_numbers = #tpu.dot_dimension_numbers<[1], [0], [0], [1], [0, 0, 1, 1], [], []>} : vector<2x12xf32>, vector<12x4xf32>, vector<2x4xf32> -> vector<2x4xf32>
    %c0_37 = arith.constant 0 : index
    %c0_38 = arith.constant 0 : index
    %60 = vector.load %arg7[%c0_37, %c0_38] : memref<1x4xf32, #tpu.memory_space<vmem>>, vector<1x4xf32>
    %61 = vector.broadcast %60 : vector<1x4xf32> to vector<2x4xf32>
    %62 = arith.addf %59, %61 : vector<2x4xf32>
    %c0_39 = arith.constant 0 : index
    %c0_40 = arith.constant 0 : index
    %63 = vector.load %arg8[%c0_39, %c0_40] : memref<2x4xf32, #tpu.memory_space<vmem>>, vector<2x4xf32>
    tpu.vector_store %arg8[%c0_39, %c0_40], %62 {strides = array<i32>} : memref<2x4xf32, #tpu.memory_space<vmem>>, vector<2x4xf32>,
    return
  }
}

</mosaic_0001>

<llo_original>
// kernel: tpu_custom_call.1
$region0: #{tpu_custom_call.1}
  #allocation0 [shape = 'u32[]', space=smem, size = 0x4, offset = 0x4, fixed_abs, tag = 'smem constant byte address 0x4 - core index']
  #allocation1 [shape = 'u32[72,128]{1,0:T(1,128)}', space=vmem, size = 0x9000, scoped, tag = 'internal scratch']
  %s0 = inlined_call_operand.vmem [shape: f32[2,20,32], index: 0, kind: input, shape index: {}]
  %s1 = inlined_call_operand.vmem [shape: f32[5,32,24], index: 1, kind: input, shape index: {}]
  %s2 = inlined_call_operand.vmem [shape: f32[1,24], index: 2, kind: input, shape index: {}]
  %s3 = inlined_call_operand.vmem [shape: f32[1,16,24], index: 3, kind: input, shape index: {}]
  %s4 = inlined_call_operand.vmem [shape: f32[24,12], index: 4, kind: input, shape index: {}]
  %s5 = inlined_call_operand.vmem [shape: f32[1,12], index: 5, kind: input, shape index: {}]
  %s6 = inlined_call_operand.vmem [shape: f32[12,4], index: 6, kind: input, shape index: {}]
  %s7 = inlined_call_operand.vmem [shape: f32[1,4], index: 7, kind: input, shape index: {}]
  %s8 = inlined_call_operand.hbm [shape: f32[2,4], index: 8, kind: output, shape index: {}]
  %s9 = sld [smem:[#allocation0]]
  $region42: #{tpu_custom_call.1} parent=0
    _
  %s11 = ssub.s32 1, %s9
  %s12 = scalar_select 0, %s11, %s9
  $region1: #{tpu_custom_call.1} parent=0
    #allocation2 [shape = 'u8[1024]{0}', space=vmem, size = 0x400, scoped, tag = 'output window, operand 0, single buffered']
    #allocation3 [shape = 's32[1]{0}', space=sflag, size = 0x4, scoped, tag = 'scoped memory for tpu_custom_call.1']
    %13 = vsyncpa [#allocation3], 0
    // Predicated region
    $region2: #{tpu_custom_call.1} parent=1 // pred_check
      _
    $region3: #{tpu_custom_call.1} parent=1 // pred_check_branch
      %15 = sbr.rel (0) target = $region5
    $region4: #{tpu_custom_call.1} parent=1 // pred_region
      _
    $region5: #{tpu_custom_call.1} parent=1 // pred_fallthru
      _
    // Predicated region
    $region6: #{tpu_custom_call.1} parent=1 // pred_check
      _
    $region7: #{tpu_custom_call.1} parent=1 // pred_check_branch
      %17 = sbr.rel (0) target = $region9
    $region8: #{tpu_custom_call.1} parent=1 // pred_region
      _
    $region9: #{tpu_custom_call.1} parent=1 // pred_fallthru
      _
    // Predicated region
    $region10: #{tpu_custom_call.1} parent=1 // pred_check
      _
    $region11: #{tpu_custom_call.1} parent=1 // pred_check_branch
      %19 = sbr.rel (0) target = $region13
    $region12: #{tpu_custom_call.1} parent=1 // pred_region
      _
    $region13: #{tpu_custom_call.1} parent=1 // pred_fallthru
      _
    // Predicated region
    $region14: #{tpu_custom_call.1} parent=1 // pred_check
      _
    $region15: #{tpu_custom_call.1} parent=1 // pred_check_branch
      %21 = sbr.rel (0) target = $region17
    $region16: #{tpu_custom_call.1} parent=1 // pred_region
      _
    $region17: #{tpu_custom_call.1} parent=1 // pred_fallthru
      _
    // Predicated region
    $region18: #{tpu_custom_call.1} parent=1 // pred_check
      _
    $region19: #{tpu_custom_call.1} parent=1 // pred_check_branch
      %23 = sbr.rel (0) target = $region21
    $region20: #{tpu_custom_call.1} parent=1 // pred_region
      _
    $region21: #{tpu_custom_call.1} parent=1 // pred_fallthru
      _
    // Predicated region
    $region22: #{tpu_custom_call.1} parent=1 // pred_check
      _
    $region23: #{tpu_custom_call.1} parent=1 // pred_check_branch
      %25 = sbr.rel (0) target = $region25
    $region24: #{tpu_custom_call.1} parent=1 // pred_region
      _
    $region25: #{tpu_custom_call.1} parent=1 // pred_fallthru
      _
    // Predicated region
    $region26: #{tpu_custom_call.1} parent=1 // pred_check
      _
    $region27: #{tpu_custom_call.1} parent=1 // pred_check_branch
      %27 = sbr.rel (0) target = $region29
    $region28: #{tpu_custom_call.1} parent=1 // pred_region
      _
    $region29: #{tpu_custom_call.1} parent=1 // pred_fallthru
      _
    // Predicated region
    $region30: #{tpu_custom_call.1} parent=1 // pred_check
      _
    $region31: #{tpu_custom_call.1} parent=1 // pred_check_branch
      %29 = sbr.rel (0) target = $region33
    $region32: #{tpu_custom_call.1} parent=1 // pred_region
      _
    $region33: #{tpu_custom_call.1} parent=1 // pred_fallthru
      _
    %v30 = vld [vmem:[%s0] sm:$0xff]
    %v31 = vld [vmem:[%s0 + $0x8] sm:$0xff]
    %v32 = vld [vmem:[%s0 + $0x10] sm:$0xf]
    %v33 = vld [vmem:[%s0 + $0x18] sm:$0xff]
    %v34 = vld [vmem:[%s0 + $0x20] sm:$0xff]
    %v35 = vld [vmem:[%s0 + $0x28] sm:$0xf]
    %v36 = vld [vmem:[%s1] sm:$0xff]
    %v37 = vld [vmem:[%s1 + $0x8] sm:$0xff]
    %v38 = vld [vmem:[%s1 + $0x10] sm:$0xff]
    %v39 = vld [vmem:[%s1 + $0x18] sm:$0xff]
    %vm46 = vcmask 1046528
    %v47 = vrot.slane %v30, 1
    %v48 = vrot.slane %v31, 1
    %v49 = vsel %vm46, %v47, %v48
    %v50 = vrot.slane %v32, 1
    %v51 = vsel %vm46, %v48, %v50
    %v52 = vrot.slane %v33, 1
    %v53 = vrot.slane %v34, 1
    %v54 = vsel %vm46, %v52, %v53
    %v55 = vrot.slane %v35, 1
    %v56 = vsel %vm46, %v53, %v55
    %s57 = scalar_lea.vmem %s1, 32
    %v58 = vld [vmem:[%s57] sm:$0xff]
    %v59 = vld [vmem:[%s57 + $0x8] sm:$0xff]
    %v60 = vld [vmem:[%s57 + $0x10] sm:$0xff]
    %v61 = vld [vmem:[%s57 + $0x18] sm:$0xff]
    %vm62 = vcmask 261120
    %v63 = vsel %vm62, %v49, 0
    %v65 = vsel %vm62, %v51, 0
    %v67 = vsel %vm62, %v54, 0
    %v69 = vsel %vm62, %v56, 0
    %71 = vmatpush.msra.mxu0 0.0
    %72 = vmatpush.msra.mxu0 0.0
    %73 = vmatpush.msra.mxu0 0.0
    %74 = vmatpush.msra.mxu0 0.0
    %75 = vmatpush.msra.mxu0 0.0
    %76 = vmatpush.msra.mxu0 0.0
    %77 = vmatpush.msra.mxu0 0.0
    %78 = vmatpush.msra.mxu0 0.0
    %79 = vmatpush.msra.mxu0 0.0
    %80 = vmatpush.msra.mxu0 0.0
    %81 = vmatpush.msra.mxu0 0.0
    %82 = vmatpush.msra.mxu0 0.0
    %83 = vmatpush.msra.mxu0 %v61
    %84 = vmatpush.msra.mxu0 %v60
    %85 = vmatpush.msra.mxu0 %v59
    %86 = vmatpush.msra.mxu0 %v58
    %87 = vmatmul.f32.gmra.mxu0 %v63
    %v88 = vpop.f32.mrf.mxu0
    %v89 = vadd.f32 0.0, %v88
    %90 = vmatmul.f32.gmra.mxu0 %v65
    %v91 = vpop.f32.mrf.mxu0
    %v92 = vadd.f32 0.0, %v91
    %93 = vmatmul.f32.gmra.mxu0 %v67
    %v94 = vpop.f32.mrf.mxu0
    %v95 = vadd.f32 0.0, %v94
    %96 = vmatmul.f32.gmra.mxu0 %v69
    %v97 = vpop.f32.mrf.mxu0
    %v98 = vadd.f32 0.0, %v97
    %99 = vdwg.mxu0
    %v100 = vsel %vm62, %v30, 0
    %v102 = vsel %vm62, %v31, 0
    %v104 = vsel %vm62, %v33, 0
    %v106 = vsel %vm62, %v34, 0
    %108 = vmatpush.msra.mxu0 0.0
    %109 = vmatpush.msra.mxu0 0.0
    %110 = vmatpush.msra.mxu0 0.0
    %111 = vmatpush.msra.mxu0 0.0
    %112 = vmatpush.msra.mxu0 0.0
    %113 = vmatpush.msra.mxu0 0.0
    %114 = vmatpush.msra.mxu0 0.0
    %115 = vmatpush.msra.mxu0 0.0
    %116 = vmatpush.msra.mxu0 0.0
    %117 = vmatpush.msra.mxu0 0.0
    %118 = vmatpush.msra.mxu0 0.0
    %119 = vmatpush.msra.mxu0 0.0
    %120 = vmatpush.msra.mxu0 %v39
    %121 = vmatpush.msra.mxu0 %v38
    %122 = vmatpush.msra.mxu0 %v37
    %123 = vmatpush.msra.mxu0 %v36
    %124 = vmatmul.f32.gmra.mxu0 %v100
    %v125 = vpop.f32.mrf.mxu0
    %v126 = vadd.f32 %v89, %v125
    %127 = vmatmul.f32.gmra.mxu0 %v102
    %v128 = vpop.f32.mrf.mxu0
    %v129 = vadd.f32 %v92, %v128
    %130 = vmatmul.f32.gmra.mxu0 %v104
    %v131 = vpop.f32.mrf.mxu0
    %v132 = vadd.f32 %v95, %v131
    %133 = vmatmul.f32.gmra.mxu0 %v106
    %v134 = vpop.f32.mrf.mxu0
    %v135 = vadd.f32 %v98, %v134
    %136 = vdwg.mxu0
    %vm137 = vcmask 1045504
    %v138 = vrot.slane %v30, 2
    %v139 = vrot.slane %v31, 2
    %v140 = vsel %vm137, %v138, %v139
    %v141 = vrot.slane %v32, 2
    %v142 = vsel %vm137, %v139, %v141
    %v143 = vrot.slane %v33, 2
    %v144 = vrot.slane %v34, 2
    %v145 = vsel %vm137, %v143, %v144
    %v146 = vrot.slane %v35, 2
    %v147 = vsel %vm137, %v144, %v146
    %s148 = scalar_lea.vmem %s1, 64
    %v149 = vld [vmem:[%s148] sm:$0xff]
    %v150 = vld [vmem:[%s148 + $0x8] sm:$0xff]
    %v151 = vld [vmem:[%s148 + $0x10] sm:$0xff]
    %v152 = vld [vmem:[%s148 + $0x18] sm:$0xff]
    %v153 = vsel %vm62, %v140, 0
    %v155 = vsel %vm62, %v142, 0
    %v157 = vsel %vm62, %v145, 0
    %v159 = vsel %vm62, %v147, 0
    %161 = vmatpush.msra.mxu0 0.0
    %162 = vmatpush.msra.mxu0 0.0
    %163 = vmatpush.msra.mxu0 0.0
    %164 = vmatpush.msra.mxu0 0.0
    %165 = vmatpush.msra.mxu0 0.0
    %166 = vmatpush.msra.mxu0 0.0
    %167 = vmatpush.msra.mxu0 0.0
    %168 = vmatpush.msra.mxu0 0.0
    %169 = vmatpush.msra.mxu0 0.0
    %170 = vmatpush.msra.mxu0 0.0
    %171 = vmatpush.msra.mxu0 0.0
    %172 = vmatpush.msra.mxu0 0.0
    %173 = vmatpush.msra.mxu0 %v152
    %174 = vmatpush.msra.mxu0 %v151
    %175 = vmatpush.msra.mxu0 %v150
    %176 = vmatpush.msra.mxu0 %v149
    %177 = vmatmul.f32.gmra.mxu0 %v153
    %v178 = vpop.f32.mrf.mxu0
    %v179 = vadd.f32 0.0, %v178
    %180 = vmatmul.f32.gmra.mxu0 %v155
    %v181 = vpop.f32.mrf.mxu0
    %v182 = vadd.f32 0.0, %v181
    %183 = vmatmul.f32.gmra.mxu0 %v157
    %v184 = vpop.f32.mrf.mxu0
    %v185 = vadd.f32 0.0, %v184
    %186 = vmatmul.f32.gmra.mxu0 %v159
    %v187 = vpop.f32.mrf.mxu0
    %v188 = vadd.f32 0.0, %v187
    %189 = vdwg.mxu0
    %v190 = vadd.f32 %v126, %v179
    %v191 = vadd.f32 %v129, %v182
    %v192 = vadd.f32 %v132, %v185
    %v193 = vadd.f32 %v135, %v188
    %vm194 = vcmask 1044480
    %v195 = vrot.slane %v30, 3
    %v196 = vrot.slane %v31, 3
    %v197 = vsel %vm194, %v195, %v196
    %v198 = vrot.slane %v32, 3
    %v199 = vsel %vm194, %v196, %v198
    %v200 = vrot.slane %v33, 3
    %v201 = vrot.slane %v34, 3
    %v202 = vsel %vm194, %v200, %v201
    %v203 = vrot.slane %v35, 3
    %v204 = vsel %vm194, %v201, %v203
    %s205 = scalar_lea.vmem %s1, 96
    %v206 = vld [vmem:[%s205] sm:$0xff]
    %v207 = vld [vmem:[%s205 + $0x8] sm:$0xff]
    %v208 = vld [vmem:[%s205 + $0x10] sm:$0xff]
    %v209 = vld [vmem:[%s205 + $0x18] sm:$0xff]
    %v210 = vsel %vm62, %v197, 0
    %v212 = vsel %vm62, %v199, 0
    %v214 = vsel %vm62, %v202, 0
    %v216 = vsel %vm62, %v204, 0
    %218 = vmatpush.msra.mxu0 0.0
    %219 = vmatpush.msra.mxu0 0.0
    %220 = vmatpush.msra.mxu0 0.0
    %221 = vmatpush.msra.mxu0 0.0
    %222 = vmatpush.msra.mxu0 0.0
    %223 = vmatpush.msra.mxu0 0.0
    %224 = vmatpush.msra.mxu0 0.0
    %225 = vmatpush.msra.mxu0 0.0
    %226 = vmatpush.msra.mxu0 0.0
    %227 = vmatpush.msra.mxu0 0.0
    %228 = vmatpush.msra.mxu0 0.0
    %229 = vmatpush.msra.mxu0 0.0
    %230 = vmatpush.msra.mxu0 %v209
    %231 = vmatpush.msra.mxu0 %v208
    %232 = vmatpush.msra.mxu0 %v207
    %233 = vmatpush.msra.mxu0 %v206
    %234 = vmatmul.f32.gmra.mxu0 %v210
    %v235 = vpop.f32.mrf.mxu0
    %v236 = vadd.f32 0.0, %v235
    %237 = vmatmul.f32.gmra.mxu0 %v212
    %v238 = vpop.f32.mrf.mxu0
    %v239 = vadd.f32 0.0, %v238
    %240 = vmatmul.f32.gmra.mxu0 %v214
    %v241 = vpop.f32.mrf.mxu0
    %v242 = vadd.f32 0.0, %v241
    %243 = vmatmul.f32.gmra.mxu0 %v216
    %v244 = vpop.f32.mrf.mxu0
    %v245 = vadd.f32 0.0, %v244
    %246 = vdwg.mxu0
    %v247 = vadd.f32 %v190, %v236
    %v248 = vadd.f32 %v191, %v239
    %v249 = vadd.f32 %v192, %v242
    %v250 = vadd.f32 %v193, %v245
    %vm251 = vcmask 1043456
    %v252 = vrot.slane %v30, 4
    %v253 = vrot.slane %v31, 4
    %v254 = vsel %vm251, %v252, %v253
    %v255 = vrot.slane %v32, 4
    %v256 = vsel %vm251, %v253, %v255
    %v257 = vrot.slane %v33, 4
    %v258 = vrot.slane %v34, 4
    %v259 = vsel %vm251, %v257, %v258
    %v260 = vrot.slane %v35, 4
    %v261 = vsel %vm251, %v258, %v260
    %s262 = scalar_lea.vmem %s1, 128
    %v263 = vld [vmem:[%s262] sm:$0xff]
    %v264 = vld [vmem:[%s262 + $0x8] sm:$0xff]
    %v265 = vld [vmem:[%s262 + $0x10] sm:$0xff]
    %v266 = vld [vmem:[%s262 + $0x18] sm:$0xff]
    %v267 = vsel %vm62, %v254, 0
    %v269 = vsel %vm62, %v256, 0
    %v271 = vsel %vm62, %v259, 0
    %v273 = vsel %vm62, %v261, 0
    %275 = vmatpush.msra.mxu0 0.0
    %276 = vmatpush.msra.mxu0 0.0
    %277 = vmatpush.msra.mxu0 0.0
    %278 = vmatpush.msra.mxu0 0.0
    %279 = vmatpush.msra.mxu0 0.0
    %280 = vmatpush.msra.mxu0 0.0
    %281 = vmatpush.msra.mxu0 0.0
    %282 = vmatpush.msra.mxu0 0.0
    %283 = vmatpush.msra.mxu0 0.0
    %284 = vmatpush.msra.mxu0 0.0
    %285 = vmatpush.msra.mxu0 0.0
    %286 = vmatpush.msra.mxu0 0.0
    %287 = vmatpush.msra.mxu0 %v266
    %288 = vmatpush.msra.mxu0 %v265
    %289 = vmatpush.msra.mxu0 %v264
    %290 = vmatpush.msra.mxu0 %v263
    %291 = vmatmul.f32.gmra.mxu0 %v267
    %v292 = vpop.f32.mrf.mxu0
    %v293 = vadd.f32 0.0, %v292
    %294 = vmatmul.f32.gmra.mxu0 %v269
    %v295 = vpop.f32.mrf.mxu0
    %v296 = vadd.f32 0.0, %v295
    %297 = vmatmul.f32.gmra.mxu0 %v271
    %v298 = vpop.f32.mrf.mxu0
    %v299 = vadd.f32 0.0, %v298
    %300 = vmatmul.f32.gmra.mxu0 %v273
    %v301 = vpop.f32.mrf.mxu0
    %v302 = vadd.f32 0.0, %v301
    %303 = vdwg.mxu0
    %v304 = vadd.f32 %v247, %v293
    %v305 = vadd.f32 %v248, %v296
    %v306 = vadd.f32 %v249, %v299
    %v307 = vadd.f32 %v250, %v302
    %v308 = vld [vmem:[%s2] sm:$0x1]
    %v310 = vperm.slane %v308, 0
    %v312 = vadd.f32 %v304, %v310
    %v313 = vadd.f32 %v305, %v310
    %v314 = vadd.f32 %v306, %v310
    %v315 = vadd.f32 %v307, %v310
    %vm316 = vcmp.ge.f32.partialorder %v312, 0.0
    %vm317 = vcmp.ge.f32.partialorder %v313, 0.0
    %vm318 = vcmp.ge.f32.partialorder %v314, 0.0
    %vm319 = vcmp.ge.f32.partialorder %v315, 0.0
    %v320 = vmul.f32 %v312, 0.01
    %v321 = vmul.f32 %v313, 0.01
    %v322 = vmul.f32 %v314, 0.01
    %v323 = vmul.f32 %v315, 0.01
    %v324 = vsel %vm316, %v312, %v320
    %v325 = vsel %vm317, %v313, %v321
    %v326 = vsel %vm318, %v314, %v322
    %v327 = vsel %vm319, %v315, %v323
    %v328 = vld [vmem:[%s3] sm:$0xff]
    %v329 = vld [vmem:[%s3 + $0x8] sm:$0xff]
    %v330 = vadd.f32 %v324, %v328
    %v331 = vadd.f32 %v325, %v329
    %v332 = vadd.f32 %v326, %v328
    %v333 = vadd.f32 %v327, %v329
    %vm334 = vcmask 195584
    %v335 = vsel %vm334, %v330, -inf
    %v336 = vsel %vm334, %v331, -inf
    %v337 = vmax.f32 %v335, %v336
    %v338 = vrot.slane %v337, 4
    %v339 = vmax.f32 %v337, %v338
    %v340 = vrot.slane %v339, 2
    %v341 = vmax.f32 %v339, %v340
    %v342 = vrot.slane %v341, 1
    %v343 = vmax.f32 %v341, %v342
    %v344 = vsel %vm334, %v332, -inf
    %v345 = vsel %vm334, %v333, -inf
    %v346 = vmax.f32 %v344, %v345
    %v347 = vrot.slane %v346, 4
    %v348 = vmax.f32 %v346, %v347
    %v349 = vrot.slane %v348, 2
    %v350 = vmax.f32 %v348, %v349
    %v351 = vrot.slane %v350, 1
    %v352 = vmax.f32 %v350, %v351
    %vm353 = vcmp.ge.f32.partialorder %v343, 0.0
    %vm354 = vcmp.ge.f32.partialorder %v352, 0.0
    %v355 = vmul.f32 %v343, 0.01
    %v356 = vmul.f32 %v352, 0.01
    %v357 = vsel %vm353, %v343, %v355
    %v358 = vsel %vm354, %v352, %v356
    %v359 = vld [vmem:[%s4] sm:$0xff]
    %v360 = vld [vmem:[%s4 + $0x8] sm:$0xff]
    %v361 = vld [vmem:[%s4 + $0x10] sm:$0xff]
    %v362 = vld [vmem:[%s5] sm:$0x1]
    %v364 = vperm.slane %v362, 0
    %vm368 = vcmask 1041409
    %v369 = vsel %vm368, %v358, %v357
    %v370 = vsel %vm334, %v369, 0
    %372 = vmatpush.msra.mxu0 0.0
    %373 = vmatpush.msra.mxu0 0.0
    %374 = vmatpush.msra.mxu0 0.0
    %375 = vmatpush.msra.mxu0 0.0
    %376 = vmatpush.msra.mxu0 0.0
    %377 = vmatpush.msra.mxu0 0.0
    %378 = vmatpush.msra.mxu0 0.0
    %379 = vmatpush.msra.mxu0 0.0
    %380 = vmatpush.msra.mxu0 0.0
    %381 = vmatpush.msra.mxu0 0.0
    %382 = vmatpush.msra.mxu0 0.0
    %383 = vmatpush.msra.mxu0 0.0
    %384 = vmatpush.msra.mxu0 0.0
    %385 = vmatpush.msra.mxu0 %v361
    %386 = vmatpush.msra.mxu0 %v360
    %387 = vmatpush.msra.mxu0 %v359
    %388 = vmatmul.f32.gmra.mxu0 %v370
    %v389 = vpop.f32.mrf.mxu0
    %v390 = vadd.f32 %v364, %v389
    %391 = vdwg.mxu0
    %vm392 = vcmp.ge.f32.partialorder %v390, 0.0
    %v393 = vmul.f32 %v390, 0.01
    %v394 = vsel %vm392, %v390, %v393
    %v395 = vld [vmem:[%s6] sm:$0xff]
    %v396 = vld [vmem:[%s6 + $0x8] sm:$0xf]
    %v397 = vld [vmem:[%s7] sm:$0x1]
    %v399 = vperm.slane %v397, 0
    %vm401 = vcmask 97280
    %v403 = vsel %vm401, %v394, 0
    %v406 = vsel %vm251, %v396, 0
    %408 = vmatpush.msra.mxu0 0.0
    %409 = vmatpush.msra.mxu0 0.0
    %410 = vmatpush.msra.mxu0 0.0
    %411 = vmatpush.msra.mxu0 0.0
    %412 = vmatpush.msra.mxu0 0.0
    %413 = vmatpush.msra.mxu0 0.0
    %414 = vmatpush.msra.mxu0 0.0
    %415 = vmatpush.msra.mxu0 0.0
    %416 = vmatpush.msra.mxu0 0.0
    %417 = vmatpush.msra.mxu0 0.0
    %418 = vmatpush.msra.mxu0 0.0
    %419 = vmatpush.msra.mxu0 0.0
    %420 = vmatpush.msra.mxu0 0.0
    %421 = vmatpush.msra.mxu0 0.0
    %422 = vmatpush.msra.mxu0 %v406
    %423 = vmatpush.msra.mxu0 %v395
    %424 = vmatmul.f32.gmra.mxu0 %v403
    %v425 = vpop.f32.mrf.mxu0
    %v426 = vadd.f32 %v399, %v425
    %427 = vdwg.mxu0
    %vm428 = vcmask 25600
    %429 = vst.msk [vmem:[#allocation2] sm:$0x3] %vm428, %v426
    // Predicated region
    $region34: #{tpu_custom_call.1} parent=1 // pred_check
      _
    $region35: #{tpu_custom_call.1} parent=1 // pred_check_branch
      %431 = sbr.rel (0) target = $region37
    $region36: #{tpu_custom_call.1} parent=1 // pred_region
      %433 = vsyncadd [#allocation3], 0
      %s435 = sshll.u32 [#allocation2], 4
      %s436 = int_to_ptr.vmem [resolvable:$true] %s435
      %s437 = sshll.u32 %s8, 4
      %s438 = int_to_ptr.hbm [resolvable:$true] %s437
      %440 = dma.vmem_to_hbm [thread:$0]  %s436, 32, %s438, [#allocation3]
    $region37: #{tpu_custom_call.1} parent=1 // pred_fallthru
      _
    // Predicated region
    $region38: #{tpu_custom_call.1} parent=1 // pred_check
      _
    $region39: #{tpu_custom_call.1} parent=1 // pred_check_branch
      %442 = sbr.rel (0) target = $region41
    $region40: #{tpu_custom_call.1} parent=1 // pred_region
      %444 = dma.done [#allocation3], 32
    $region41: #{tpu_custom_call.1} parent=1 // pred_fallthru
      _
    %445 = vsyncpa [#allocation3], 1

</llo_original>
